<compile_context>
chip_gen: v6e
topology: v6e:2x2x1
jax: 0.10.0
libtpu: 0.0.40
codegen_flags: <defaults>
</compile_context>

<pallas_src>
import jax
import jax.numpy as jnp
from jax import lax
from jax.experimental import pallas as pl
from jax.experimental.pallas import tpu as pltpu


def value_head_kernel(x_ref, wc_ref, scal_ref, w1_ref, b1_ref, w2_ref,
                      o_ref, y_acc):
    c = pl.program_id(0)
    tcp = x_ref.shape[1]          # channel-pair tile
    cp_total = wc_ref.shape[1]    # total channel pairs (weight is resident)

    @pl.when(c == 0)
    def _init():
        y_acc[...] = jnp.zeros_like(y_acc)

    # Partial lane-packed 1x1 conv for this channel-pair chunk:
    # y_acc[n, l] += sum_cp x[n, cp, l] * w[2*cp + l//64]
    if tcp == cp_total:
        wc = wc_ref[...]                                   # single-step grid
    else:
        start = pl.multiple_of(c * tcp, tcp)               # tcp is a mult. of 8
        wc = wc_ref[:, pl.ds(start, tcp), :]
    y_acc[...] += jnp.sum(x_ref[...] * wc, axis=1)

    @pl.when(c == pl.num_programs(0) - 1)
    def _finalize():
        conv_b = scal_ref[0]
        gamma = scal_ref[1]
        beta = scal_ref[2]
        fc2_b = scal_ref[3]

        acc = y_acc[...]                                    # (N, 128)
        # Fold the two 64-lane halves (even / odd channels) -> conv output.
        y = acc[:, :64] + acc[:, 64:] + conv_b              # (N, 64)

        # BatchNorm2d(1), training-mode forward: two-pass stats over N*H*W,
        # biased variance, eps = 1e-5 (matches PyTorch).
        inv_cnt = 1.0 / float(y.shape[0] * y.shape[1])
        mean = jnp.sum(y) * inv_cnt
        d = y - mean
        var = jnp.sum(d * d) * inv_cnt
        y = d * (lax.rsqrt(var + 1e-5) * gamma) + beta
        y = jnp.maximum(y, 0.0)                              # ReLU

        # fc1, transposed: h_t[o, n] = relu(sum_k w1[o, k] * y[n, k] + b1[o]).
        h_t = lax.dot_general(
            w1_ref[...], y,
            dimension_numbers=(((1,), (1,)), ((), ())),
            preferred_element_type=jnp.float32)              # (256, N)
        h_t = jnp.maximum(h_t + b1_ref[...], 0.0)

        # fc2 + tanh -> lane-dense (1, N) output row.
        v = jnp.dot(w2_ref[...], h_t,
                    preferred_element_type=jnp.float32) + fc2_b
        o_ref[...] = jnp.tanh(v)


def _pick_pair_tile(n, cp, budget_bytes):
    """Channel-pair tile: multiple-of-8 divisor of cp whose (n, t, 128) f32
    block fits the budget; else the smallest multiple-of-8 divisor; else cp."""
    divisors = [t for t in range(8, cp + 1, 8) if cp % t == 0]
    fitting = [t for t in divisors if n * t * 128 * 4 <= budget_bytes]
    if fitting:
        return max(fitting)
    if divisors:
        return min(divisors)
    return cp


@jax.jit
def value_head(x_nchw, params):
    """x_nchw: (N, C, 8, 8) float32. Returns (N, 1) float32 in [-1, 1]."""
    conv_w, conv_b, gamma, beta, fc1_w, fc1_b, fc2_w, fc2_b = params
    N, C, H, W = x_nchw.shape
    S = H * W
    assert S == 64, "ValueHead's .view(N, 64) implies an 8x8 board"

    w = conv_w.reshape(C).astype(jnp.float32)
    x = x_nchw.astype(jnp.float32)
    if C % 2:
        # Pad to an even channel count (zero weight) so pairs pack into 128 lanes.
        x = jnp.pad(x, ((0, 0), (0, 1), (0, 0), (0, 0)))
        w = jnp.pad(w, (0, 1))
        C += 1
    Cp = C // 2
    L = 2 * S                                     # 128 lanes = 2 channels x 64

    # Free, row-major-contiguous lane packing: (N, C, 8, 8) -> (N, C//2, 128).
    x_p = x.reshape(N, Cp, L)
    # Lane-packed conv weight: lane l of pair cp holds w[2*cp + l//64].
    wc = jnp.repeat(w.reshape(Cp, 2), S, axis=1).reshape(1, Cp, L)

    scalars = jnp.concatenate(
        [conv_b.reshape(1), gamma.reshape(1),
         beta.reshape(1), fc2_b.reshape(1)]).astype(jnp.float32)    # (4,) SMEM
    w1 = fc1_w.astype(jnp.float32)                 # (256, 64) PyTorch (out,in)
    b1 = fc1_b.reshape(256, 1).astype(jnp.float32) # column -> broadcasts over lane-N
    w2 = fc2_w.astype(jnp.float32)                 # (1, 256)

    # Generation-aware VMEM budgeting (v7x: 64 MiB physical; v5e/v6e: 128 MiB).
    try:
        vmem_cap = int(pltpu.get_tpu_info().vmem_capacity_bytes)
    except Exception:
        vmem_cap = 64 << 20
    xblk_budget = (16 << 20) if vmem_cap >= (96 << 20) else (6 << 20)

    TCp = _pick_pair_tile(N, Cp, xblk_budget)
    grid = (Cp // TCp,)

    xblk_bytes = N * TCp * L * 4                   # true lane-dense block bytes
    resident_bytes = (Cp * L + N * L + w1.size + b1.size + w2.size) * 4
    vmem_limit = int(min(int(0.75 * vmem_cap),
                         max(2 * xblk_bytes + 2 * resident_bytes + (4 << 20),
                             16 << 20)))

    cost = pl.CostEstimate(
        flops=2 * N * C * S + 10 * N * S + 2 * N * S * 256 + 2 * N * 256,
        transcendentals=N + 1,
        bytes_accessed=(x_p.size + wc.size + scalars.size + w1.size + b1.size
                        + w2.size + N) * 4,
    )

    out_row = pl.pallas_call(
        value_head_kernel,
        out_shape=jax.ShapeDtypeStruct((1, N), jnp.float32),
        grid=grid,
        in_specs=[
            pl.BlockSpec((N, TCp, L), lambda c: (0, c, 0)),      # x: streamed, lane-dense
            pl.BlockSpec((1, Cp, L), lambda c: (0, 0, 0)),       # conv weight: resident (1 DMA)
            pl.BlockSpec(memory_space=pltpu.MemorySpace.SMEM),   # (4,) scalar params
            pl.BlockSpec((256, S), lambda c: (0, 0)),            # fc1 weight (resident)
            pl.BlockSpec((256, 1), lambda c: (0, 0)),            # fc1 bias column
            pl.BlockSpec((1, 256), lambda c: (0, 0)),            # fc2 weight row
        ],
        out_specs=pl.BlockSpec((1, N), lambda c: (0, 0)),        # lane-dense result row
        scratch_shapes=[pltpu.VMEM((N, L), jnp.float32)],        # packed conv accumulator
        compiler_params=pltpu.CompilerParams(
            dimension_semantics=("arbitrary",),                  # channel axis is a reduction
            vmem_limit_bytes=vmem_limit,
        ),
        cost_estimate=cost,
    )(x_p, wc, scalars, w1, b1, w2)

    return out_row.reshape(N, 1)


def value_head_reference(x_nchw, params):
    """Pure-JAX mirror of the PyTorch module (training-mode BatchNorm)."""
    conv_w, conv_b, gamma, beta, fc1_w, fc1_b, fc2_w, fc2_b = params
    N, C, H, W = x_nchw.shape
    y = jnp.einsum('nchw,c->nhw', x_nchw, conv_w.reshape(C)) + conv_b.reshape(())
    mean = jnp.mean(y)
    var = jnp.mean((y - mean) ** 2)                    # biased batch variance
    y = (y - mean) / jnp.sqrt(var + 1e-5) * gamma.reshape(()) + beta.reshape(())
    y = jnp.maximum(y, 0.0).reshape(N, H * W)
    h = jnp.maximum(y @ fc1_w.T + fc1_b, 0.0)
    v = h @ fc2_w.T + fc2_b
    return jnp.tanh(v)


def init_params(key, input_channels):
    """Deterministic synthetic parameters with PyTorch-native shapes."""
    k = jax.random.split(key, 6)
    C = input_channels
    conv_w = jax.random.normal(k[0], (1, C, 1, 1), jnp.float32) * 0.1   # Conv2d(C,1,1).weight
    conv_b = jax.random.normal(k[1], (1,), jnp.float32) * 0.1           # Conv2d bias
    gamma = jnp.ones((1,), jnp.float32)                                 # bn1.weight
    beta = jnp.zeros((1,), jnp.float32)                                 # bn1.bias
    fc1_w = jax.random.normal(k[2], (256, 64), jnp.float32) * 0.05      # Linear(64,256).weight
    fc1_b = jax.random.normal(k[3], (256,), jnp.float32) * 0.05
    fc2_w = jax.random.normal(k[4], (1, 256), jnp.float32) * 0.05       # Linear(256,1).weight
    fc2_b = jax.random.normal(k[5], (1,), jnp.float32) * 0.05
    return (conv_w, conv_b, gamma, beta, fc1_w, fc1_b, fc2_w, fc2_b)


if __name__ == "__main__":
    key = jax.random.PRNGKey(0)
    kx, kp = jax.random.split(key)

    # Small, module-consistent shapes: the .view(N, 64) forces an 8x8 board.
    N, C, H, W = 2, 4, 8, 8
    x = jax.random.normal(kx, (N, C, H, W), jnp.float32)
    params = init_params(kp, C)

    out = jax.block_until_ready(value_head(x, params))
    assert out.shape == (N, 1) and out.dtype == jnp.float32
    assert bool(jnp.all(jnp.abs(out) <= 1.0))          # tanh range

    ref = value_head_reference(x, params)
    assert bool(jnp.allclose(out, ref, atol=3e-5, rtol=3e-5)), (out, ref)

    print("KERNEL_OK")
</pallas_src>

<mosaic_0001>
module attributes {stable_mosaic.version = 11 : i64} {
  func.func @value_head_kernel(%arg0: i32, %arg1: memref<2x2x128xf32, #tpu.memory_space<vmem>>, %arg2: memref<1x2x128xf32, #tpu.memory_space<vmem>>, %arg3: memref<4xf32, #tpu.memory_space<smem>>, %arg4: memref<256x64xf32, #tpu.memory_space<vmem>>, %arg5: memref<256x1xf32, #tpu.memory_space<vmem>>, %arg6: memref<1x256xf32, #tpu.memory_space<vmem>>, %arg7: memref<1x2xf32, #tpu.memory_space<vmem>>, %arg8: memref<2x128xf32, #tpu.memory_space<vmem>>) attributes {dimension_semantics = [#tpu.dimension_semantics<arbitrary>], iteration_bounds = array<i64: 1>, scalar_prefetch = 0 : i64, scratch_operands = 1 : i64, tpu.core_type = #tpu.core_type<tc>, window_params = [{transform_indices = @transform_0, window_bounds = array<i64: 2, 2, 128>}, {pipeline_mode = #tpu.pipeline_mode<synchronous>, transform_indices = @transform_1, window_bounds = array<i64: 1, 2, 128>}, {transform_indices = @transform_2, window_bounds = array<i64: 4>}, {pipeline_mode = #tpu.pipeline_mode<synchronous>, transform_indices = @transform_3, window_bounds = array<i64: 256, 64>}, {pipeline_mode = #tpu.pipeline_mode<synchronous>, transform_indices = @transform_4, window_bounds = array<i64: 256, 1>}, {pipeline_mode = #tpu.pipeline_mode<synchronous>, transform_indices = @transform_5, window_bounds = array<i64: 1, 256>}, {pipeline_mode = #tpu.pipeline_mode<synchronous>, transform_indices = @transform_6, window_bounds = array<i64: 1, 2>}]} {
    %c0_i32 = arith.constant 0 : i32
    %0 = arith.cmpi eq, %arg0, %c0_i32 : i32
    %1 = arith.extui %0 : i1 to i32
    %c0_i32_0 = arith.constant 0 : i32
    %2 = arith.cmpi ne, %1, %c0_i32_0 : i32
    scf.if %2 {
      %cst_12 = arith.constant 0.000000e+00 : f32
      %14 = vector.broadcast %cst_12 : f32 to vector<2x128xf32>
      %c0_13 = arith.constant 0 : index
      %c0_14 = arith.constant 0 : index
      %15 = vector.load %arg8[%c0_13, %c0_14] : memref<2x128xf32, #tpu.memory_space<vmem>>, vector<2x128xf32>
      tpu.vector_store %arg8[%c0_13, %c0_14], %14 {strides = array<i32>} : memref<2x128xf32, #tpu.memory_space<vmem>>, vector<2x128xf32>,
    } else {
    }
    %c0 = arith.constant 0 : index
    %c0_1 = arith.constant 0 : index
    %c0_2 = arith.constant 0 : index
    %3 = vector.load %arg2[%c0, %c0_1, %c0_2] : memref<1x2x128xf32, #tpu.memory_space<vmem>>, vector<1x2x128xf32>
    %c0_3 = arith.constant 0 : index
    %c0_4 = arith.constant 0 : index
    %4 = vector.load %arg8[%c0_3, %c0_4] : memref<2x128xf32, #tpu.memory_space<vmem>>, vector<2x128xf32>
    %c0_5 = arith.constant 0 : index
    %c0_6 = arith.constant 0 : index
    %c0_7 = arith.constant 0 : index
    %5 = vector.load %arg1[%c0_5, %c0_6, %c0_7] : memref<2x2x128xf32, #tpu.memory_space<vmem>>, vector<2x2x128xf32>
    %6 = vector.broadcast %3 : vector<1x2x128xf32> to vector<2x2x128xf32>
    %7 = arith.mulf %5, %6 : vector<2x2x128xf32>
    %cst = arith.constant dense<0.000000e+00> : vector<2x128xf32>
    %8 = vector.multi_reduction <add>, %7, %cst [1] : vector<2x2x128xf32> to vector<2x128xf32>
    %9 = arith.addf %4, %8 : vector<2x128xf32>
    %c0_8 = arith.constant 0 : index
    %c0_9 = arith.constant 0 : index
    %10 = vector.load %arg8[%c0_8, %c0_9] : memref<2x128xf32, #tpu.memory_space<vmem>>, vector<2x128xf32>
    tpu.vector_store %arg8[%c0_8, %c0_9], %9 {strides = array<i32>} : memref<2x128xf32, #tpu.memory_space<vmem>>, vector<2x128xf32>,
    %c0_i32_10 = arith.constant 0 : i32
    %11 = arith.cmpi eq, %arg0, %c0_i32_10 : i32
    %12 = arith.extui %11 : i1 to i32
    %c0_i32_11 = arith.constant 0 : i32
    %13 = arith.cmpi ne, %12, %c0_i32_11 : i32
    scf.if %13 {
      %c0_12 = arith.constant 0 : index
      %14 = memref.load %arg3[%c0_12] : memref<4xf32, #tpu.memory_space<smem>>
      %c1 = arith.constant 1 : index
      %15 = memref.load %arg3[%c1] : memref<4xf32, #tpu.memory_space<smem>>
      %c2 = arith.constant 2 : index
      %16 = memref.load %arg3[%c2] : memref<4xf32, #tpu.memory_space<smem>>
      %c3 = arith.constant 3 : index
      %17 = memref.load %arg3[%c3] : memref<4xf32, #tpu.memory_space<smem>>
      %c0_13 = arith.constant 0 : index
      %c0_14 = arith.constant 0 : index
      %18 = vector.load %arg8[%c0_13, %c0_14] : memref<2x128xf32, #tpu.memory_space<vmem>>, vector<2x128xf32>
      %19 = vector.extract_strided_slice %18 {offsets = [0, 0], sizes = [2, 64], strides = [1, 1]} : vector<2x128xf32> to vector<2x64xf32>
      %20 = vector.extract_strided_slice %18 {offsets = [0, 64], sizes = [2, 64], strides = [1, 1]} : vector<2x128xf32> to vector<2x64xf32>
      %21 = arith.addf %19, %20 : vector<2x64xf32>
      %22 = vector.broadcast %14 : f32 to vector<2x64xf32>
      %23 = arith.addf %21, %22 : vector<2x64xf32>
      %24 = vector.shape_cast %23 : vector<2x64xf32> to vector<1x2x64xf32>
      %cst_15 = arith.constant dense<0.000000e+00> : vector<1xf32>
      %25 = vector.multi_reduction <add>, %24, %cst_15 [1, 2] : vector<1x2x64xf32> to vector<1xf32>
      %26 = vector.shape_cast %25 : vector<1xf32> to vector<1x1x1xf32>
      %27 = vector.extract %26[0, 0, 0] : f32 from vector<1x1x1xf32>
      %cst_16 = arith.constant 7.812500e-03 : f32
      %28 = arith.mulf %27, %cst_16 : f32
      %29 = vector.broadcast %28 : f32 to vector<2x64xf32>
      %30 = arith.subf %23, %29 : vector<2x64xf32>
      %31 = arith.mulf %30, %30 : vector<2x64xf32>
      %32 = vector.shape_cast %31 : vector<2x64xf32> to vector<1x2x64xf32>
      %cst_17 = arith.constant dense<0.000000e+00> : vector<1xf32>
      %33 = vector.multi_reduction <add>, %32, %cst_17 [1, 2] : vector<1x2x64xf32> to vector<1xf32>
      %34 = vector.shape_cast %33 : vector<1xf32> to vector<1x1x1xf32>
      %35 = vector.extract %34[0, 0, 0] : f32 from vector<1x1x1xf32>
      %cst_18 = arith.constant 7.812500e-03 : f32
      %36 = arith.mulf %35, %cst_18 : f32
      %cst_19 = arith.constant 9.99999974E-6 : f32
      %37 = arith.addf %36, %cst_19 : f32
      %38 = math.rsqrt %37 : f32
      %39 = arith.mulf %38, %15 : f32
      %40 = vector.broadcast %39 : f32 to vector<2x64xf32>
      %41 = arith.mulf %30, %40 : vector<2x64xf32>
      %42 = vector.broadcast %16 : f32 to vector<2x64xf32>
      %43 = arith.addf %41, %42 : vector<2x64xf32>
      %cst_20 = arith.constant 0.000000e+00 : f32
      %44 = vector.broadcast %cst_20 : f32 to vector<2x64xf32>
      %45 = arith.maximumf %43, %44 : vector<2x64xf32>
      %c0_21 = arith.constant 0 : index
      %c0_22 = arith.constant 0 : index
      %46 = vector.load %arg4[%c0_21, %c0_22] : memref<256x64xf32, #tpu.memory_space<vmem>>, vector<256x64xf32>
      %cst_23 = arith.constant dense<0.000000e+00> : vector<256x2xf32>
      %47 = tpu.matmul %46, %45, %cst_23 {dimension_numbers = #tpu.dot_dimension_numbers<[1], [1], [0], [0], [0, 0, 1, 0], [], []>} : vector<256x64xf32>, vector<2x64xf32>, vector<256x2xf32> -> vector<256x2xf32>
      %c0_24 = arith.constant 0 : index
      %c0_25 = arith.constant 0 : index
      %48 = vector.load %arg5[%c0_24, %c0_25] : memref<256x1xf32, #tpu.memory_space<vmem>>, vector<256x1xf32>
      %49 = vector.broadcast %48 : vector<256x1xf32> to vector<256x2xf32>
      %50 = arith.addf %47, %49 : vector<256x2xf32>
      %cst_26 = arith.constant 0.000000e+00 : f32
      %51 = vector.broadcast %cst_26 : f32 to vector<256x2xf32>
      %52 = arith.maximumf %50, %51 : vector<256x2xf32>
      %c0_27 = arith.constant 0 : index
      %c0_28 = arith.constant 0 : index
      %53 = vector.load %arg6[%c0_27, %c0_28] : memref<1x256xf32, #tpu.memory_space<vmem>>, vector<1x256xf32>
      %cst_29 = arith.constant dense<0.000000e+00> : vector<1x2xf32>
      %54 = tpu.matmul %53, %52, %cst_29 {dimension_numbers = #tpu.dot_dimension_numbers<[1], [0], [0], [1], [0, 0, 1, 1], [], []>} : vector<1x256xf32>, vector<256x2xf32>, vector<1x2xf32> -> vector<1x2xf32>
      %55 = vector.broadcast %17 : f32 to vector<1x2xf32>
      %56 = arith.addf %54, %55 : vector<1x2xf32>
      %57 = math.tanh %56 : vector<1x2xf32>
      %c0_30 = arith.constant 0 : index
      %c0_31 = arith.constant 0 : index
      %58 = vector.load %arg7[%c0_30, %c0_31] : memref<1x2xf32, #tpu.memory_space<vmem>>, vector<1x2xf32>
      tpu.vector_store %arg7[%c0_30, %c0_31], %57 {strides = array<i32>} : memref<1x2xf32, #tpu.memory_space<vmem>>, vector<1x2xf32>,
    } else {
    }
    return
  }
  func.func @transform_0(%arg0: i32) -> (i32, i32, i32) {
    %c0_i32 = arith.constant 0 : i32
    %c0_i32_0 = arith.constant 0 : i32
    %c0_i32_1 = arith.constant 0 : i32
    return %c0_i32, %arg0, %c0_i32_0 : i32, i32, i32
  }
  func.func @transform_1(%arg0: i32) -> (i32, i32, i32) {
    %c0_i32 = arith.constant 0 : i32
    %c0_i32_0 = arith.constant 0 : i32
    %c0_i32_1 = arith.constant 0 : i32
    %c0_i32_2 = arith.constant 0 : i32
    return %c0_i32, %c0_i32_0, %c0_i32_1 : i32, i32, i32
  }
  func.func @transform_2(%arg0: i32) -> i32 {
    %c0_i32 = arith.constant 0 : i32
    %c0_i32_0 = arith.constant 0 : i32
    return %c0_i32 : i32
  }
  func.func @transform_3(%arg0: i32) -> (i32, i32) {
    %c0_i32 = arith.constant 0 : i32
    %c0_i32_0 = arith.constant 0 : i32
    %c0_i32_1 = arith.constant 0 : i32
    return %c0_i32, %c0_i32_0 : i32, i32
  }
  func.func @transform_4(%arg0: i32) -> (i32, i32) {
    %c0_i32 = arith.constant 0 : i32
    %c0_i32_0 = arith.constant 0 : i32
    %c0_i32_1 = arith.constant 0 : i32
    return %c0_i32, %c0_i32_0 : i32, i32
  }
  func.func @transform_5(%arg0: i32) -> (i32, i32) {
    %c0_i32 = arith.constant 0 : i32
    %c0_i32_0 = arith.constant 0 : i32
    %c0_i32_1 = arith.constant 0 : i32
    return %c0_i32, %c0_i32_0 : i32, i32
  }
  func.func @transform_6(%arg0: i32) -> (i32, i32) {
    %c0_i32 = arith.constant 0 : i32
    %c0_i32_0 = arith.constant 0 : i32
    %c0_i32_1 = arith.constant 0 : i32
    return %c0_i32, %c0_i32_0 : i32, i32
  }
}

</mosaic_0001>

<llo_original>
// kernel: value_head.1
$region0: #{value_head.1}
  #allocation0 [shape = 'u32[]', space=smem, size = 0x4, offset = 0x4, fixed_abs, tag = 'smem constant byte address 0x4 - core index']
  #allocation1 [shape = 'u32[144,128]{1,0:T(1,128)}', space=vmem, size = 0x12000, scoped, tag = 'internal scratch']
  #allocation2 [shape = 'f32[2,128]{1,0:T(2,128)}', space=vmem, size = 0x400, scoped, tag = 'scratch operand']
  %s0 = inlined_call_operand.vmem [shape: f32[2,2,128], index: 0, kind: input, shape index: {}]
  %s1 = inlined_call_operand.vmem [shape: f32[1,2,128], index: 1, kind: input, shape index: {}]
  %s2 = inlined_call_operand.vmem [shape: f32[4], index: 2, kind: input, shape index: {}]
  %s3 = inlined_call_operand.vmem [shape: f32[256,64], index: 3, kind: input, shape index: {}]
  %s4 = inlined_call_operand.vmem [shape: f32[256,1], index: 4, kind: input, shape index: {}]
  %s5 = inlined_call_operand.vmem [shape: f32[1,256], index: 5, kind: input, shape index: {}]
  %s6 = inlined_call_operand.hbm [shape: f32[1,2], index: 6, kind: output, shape index: {}]
  %s7 = sld [smem:[#allocation0]]
  $region46: #{value_head.1} parent=0
    _
  %s9 = ssub.s32 1, %s7
  %s10 = scalar_select 0, %s9, %s7
  $region1: #{value_head.1} parent=0
    #allocation3 [shape = 'u8[512]{0}', space=smem, size = 0x200, scoped, tag = 'input window, operand 2, single buffered']
    #allocation4 [shape = 's32[1]{0}', space=sflag, size = 0x4, scoped, tag = 'scoped memory for value_head.1']
    #allocation5 [shape = 's32[1]{0}', space=sflag, size = 0x4, scoped, tag = 'scoped memory for value_head.1']
    #allocation6 [shape = 'u8[512]{0}', space=vmem, size = 0x400, scoped, tag = 'output window, operand 0, single buffered']
    %11 = vsyncpa [#allocation5], 0
    %12 = vsyncpa [#allocation4], 0
    // Predicated region
    $region2: #{value_head.1} parent=1 // pred_check
      _
    $region3: #{value_head.1} parent=1 // pred_check_branch
      %14 = sbr.rel (0) target = $region5
    $region4: #{value_head.1} parent=1 // pred_region
      _
    $region5: #{value_head.1} parent=1 // pred_fallthru
      _
    // Predicated region
    $region6: #{value_head.1} parent=1 // pred_check
      _
    $region7: #{value_head.1} parent=1 // pred_check_branch
      %16 = sbr.rel (0) target = $region9
    $region8: #{value_head.1} parent=1 // pred_region
      _
    $region9: #{value_head.1} parent=1 // pred_fallthru
      _
    // Predicated region
    $region10: #{value_head.1} parent=1 // pred_check
      _
    $region11: #{value_head.1} parent=1 // pred_check_branch
      %18 = sbr.rel (0) target = $region13
    $region12: #{value_head.1} parent=1 // pred_region
      %s20 = ssub.s32 16, 16
      %21 = vsyncadd [#allocation5], %s20
      %s23 = sshll.u32 %s2, 4
      %s24 = int_to_ptr.vmem [resolvable:$true] %s23
      %26 = dma.vmem_to_smem %s24, 16, [#allocation3], [#allocation5]
    $region13: #{value_head.1} parent=1 // pred_fallthru
      _
    // Predicated region
    $region14: #{value_head.1} parent=1 // pred_check
      _
    $region15: #{value_head.1} parent=1 // pred_check_branch
      %28 = sbr.rel (0) target = $region17
    $region16: #{value_head.1} parent=1 // pred_region
      _
    $region17: #{value_head.1} parent=1 // pred_fallthru
      _
    // Predicated region
    $region18: #{value_head.1} parent=1 // pred_check
      _
    $region19: #{value_head.1} parent=1 // pred_check_branch
      %30 = sbr.rel (0) target = $region21
    $region20: #{value_head.1} parent=1 // pred_region
      _
    $region21: #{value_head.1} parent=1 // pred_fallthru
      _
    // Predicated region
    $region22: #{value_head.1} parent=1 // pred_check
      _
    $region23: #{value_head.1} parent=1 // pred_check_branch
      %32 = sbr.rel (0) target = $region25
    $region24: #{value_head.1} parent=1 // pred_region
      _
    $region25: #{value_head.1} parent=1 // pred_fallthru
      _
    // Predicated region
    $region26: #{value_head.1} parent=1 // pred_check
      _
    $region27: #{value_head.1} parent=1 // pred_check_branch
      %34 = sbr.rel (0) target = $region29
    $region28: #{value_head.1} parent=1 // pred_region
      %35 = dma.done [#allocation5], 16
    $region29: #{value_head.1} parent=1 // pred_fallthru
      _
    %36 = sfence
    %p37 = scmp.eq.s32.totalorder 0, 0
    // Predicated region
    $region30: #{value_head.1} parent=1 // pred_check
      %p38 = pneg %p37
    $region31: #{value_head.1} parent=1 // pred_check_branch
      %40 = sbr.rel (%p38) target = $region33
    $region32: #{value_head.1} parent=1 // pred_region
      %41 = vst [vmem:[#allocation2] sm:$0x3] 0.0
    $region33: #{value_head.1} parent=1 // pred_fallthru
      _
    %v42 = vld [vmem:[%s1] sm:$0x3]
    %v43 = vld [vmem:[#allocation2] sm:$0x3]
    %v44 = vld [vmem:[%s0] sm:$0x3]
    %v45 = vld [vmem:[%s0 + $0x2] sm:$0x3]
    %v46 = vmul.f32 %v44, %v42
    %v47 = vmul.f32 %v45, %v42
    %vm48 = vcmask 1041408
    %v49 = vsel %vm48, %v46, 0.0
    %v50 = vrot.slane %v49, 4
    %v51 = vadd.f32 %v49, %v50
    %v52 = vrot.slane %v51, 2
    %v53 = vadd.f32 %v51, %v52
    %v54 = vrot.slane %v53, 1
    %v55 = vadd.f32 %v53, %v54
    %v56 = vsel %vm48, %v47, 0.0
    %v57 = vrot.slane %v56, 4
    %v58 = vadd.f32 %v56, %v57
    %v59 = vrot.slane %v58, 2
    %v60 = vadd.f32 %v58, %v59
    %v61 = vrot.slane %v60, 1
    %v62 = vadd.f32 %v60, %v61
    %vm65 = vcmask 1041409
    %v66 = vsel %vm65, %v62, %v55
    %v68 = vadd.f32 %v43, %v66
    %69 = vst [vmem:[#allocation2] sm:$0x3] %v68
    // Predicated region
    $region34: #{value_head.1} parent=1 // pred_check
      %p70 = pneg %p37
    $region35: #{value_head.1} parent=1 // pred_check_branch
      %72 = sbr.rel (%p70) target = $region37
    $region36: #{value_head.1} parent=1 // pred_region
      %s73 = sld [smem:[#allocation3]]
      %s74 = sld [smem:[#allocation3 + $0x1]]
      %s75 = sld [smem:[#allocation3 + $0x2]]
      %s76 = sld [smem:[#allocation3 + $0x3]]
      %v77 = vld [vmem:[#allocation2] sm:$0x3]
      %79 = vrot.lane.b32.xlu0 %v77, 64
      %v80 = vpop.permute.xlu0 %79
      %v82 = vadd.f32 %v77, %v80
      %v83 = vstv %s73
      %v84 = vadd.f32 %v82, %v83
      %vm85 = vcmask 517120
      %v86 = vsel %vm85, %v84, 0.0
      %87 = vadd.xlane.f32.xlu0 %v86
      %v88 = vpop.xlane.xlu0 %87
      %v89 = vrot.slane %v88, 4
      %v90 = vadd.f32 %v88, %v89
      %v91 = vrot.slane %v90, 2
      %v92 = vadd.f32 %v90, %v91
      %v93 = vrot.slane %v92, 1
      %v94 = vadd.f32 %v92, %v93
      %s95 = vtos %v94
      %s96 = smul.f32 %s95, 0.0078125
      %v97 = vstv %s96
      %v98 = vsub.f32 %v84, %v97
      %v99 = vmul.f32 %v98, %v98
      %v100 = vsel %vm85, %v99, 0.0
      %101 = vadd.xlane.f32.xlu0 %v100
      %v102 = vpop.xlane.xlu0 %101
      %v103 = vrot.slane %v102, 4
      %v104 = vadd.f32 %v102, %v103
      %v105 = vrot.slane %v104, 2
      %v106 = vadd.f32 %v104, %v105
      %v107 = vrot.slane %v106, 1
      %v108 = vadd.f32 %v106, %v107
      %s109 = vtos %v108
      %s110 = smul.f32 %s109, 0.0078125
      %s111 = sadd.f32 %s110, 1e-05
      %v112 = vstv %s111
      %v113 = vrsqrt.pop %v112
      %s114 = vtos %v113
      %s115 = smul.f32 %s114, %s74
      %v116 = vstv %s115
      %v117 = vmul.f32 %v98, %v116
      %v118 = vstv %s75
      %v119 = vadd.f32 %v117, %v118
      %v120 = vmax.f32 %v119, 0.0
      %v121 = vld [vmem:[%s3] sm:$0xff]
      %v122 = vld [vmem:[%s3 + $0x8] sm:$0xff]
      %v123 = vld [vmem:[%s3 + $0x10] sm:$0xff]
      %v124 = vld [vmem:[%s3 + $0x18] sm:$0xff]
      %v125 = vld [vmem:[%s3 + $0x20] sm:$0xff]
      %v126 = vld [vmem:[%s3 + $0x28] sm:$0xff]
      %v127 = vld [vmem:[%s3 + $0x30] sm:$0xff]
      %v128 = vld [vmem:[%s3 + $0x38] sm:$0xff]
      %v129 = vld [vmem:[%s3 + $0x40] sm:$0xff]
      %v130 = vld [vmem:[%s3 + $0x48] sm:$0xff]
      %v131 = vld [vmem:[%s3 + $0x50] sm:$0xff]
      %v132 = vld [vmem:[%s3 + $0x58] sm:$0xff]
      %v133 = vld [vmem:[%s3 + $0x60] sm:$0xff]
      %v134 = vld [vmem:[%s3 + $0x68] sm:$0xff]
      %v135 = vld [vmem:[%s3 + $0x70] sm:$0xff]
      %v136 = vld [vmem:[%s3 + $0x78] sm:$0xff]
      %v137 = vld [vmem:[%s3 + $0x80] sm:$0xff]
      %v138 = vld [vmem:[%s3 + $0x88] sm:$0xff]
      %v139 = vld [vmem:[%s3 + $0x90] sm:$0xff]
      %v140 = vld [vmem:[%s3 + $0x98] sm:$0xff]
      %v141 = vld [vmem:[%s3 + $0xa0] sm:$0xff]
      %v142 = vld [vmem:[%s3 + $0xa8] sm:$0xff]
      %v143 = vld [vmem:[%s3 + $0xb0] sm:$0xff]
      %v144 = vld [vmem:[%s3 + $0xb8] sm:$0xff]
      %v145 = vld [vmem:[%s3 + $0xc0] sm:$0xff]
      %v146 = vld [vmem:[%s3 + $0xc8] sm:$0xff]
      %v147 = vld [vmem:[%s3 + $0xd0] sm:$0xff]
      %v148 = vld [vmem:[%s3 + $0xd8] sm:$0xff]
      %v149 = vld [vmem:[%s3 + $0xe0] sm:$0xff]
      %v150 = vld [vmem:[%s3 + $0xe8] sm:$0xff]
      %v151 = vld [vmem:[%s3 + $0xf0] sm:$0xff]
      %v152 = vld [vmem:[%s3 + $0xf8] sm:$0xff]
      %v153 = vld [vmem:[%s4] sm:$0xff]
      %v154 = vld [vmem:[%s4 + $0x8] sm:$0xff]
      %v155 = vld [vmem:[%s4 + $0x10] sm:$0xff]
      %v156 = vld [vmem:[%s4 + $0x18] sm:$0xff]
      %v157 = vld [vmem:[%s4 + $0x20] sm:$0xff]
      %v158 = vld [vmem:[%s4 + $0x28] sm:$0xff]
      %v159 = vld [vmem:[%s4 + $0x30] sm:$0xff]
      %v160 = vld [vmem:[%s4 + $0x38] sm:$0xff]
      %v161 = vld [vmem:[%s4 + $0x40] sm:$0xff]
      %v162 = vld [vmem:[%s4 + $0x48] sm:$0xff]
      %v163 = vld [vmem:[%s4 + $0x50] sm:$0xff]
      %v164 = vld [vmem:[%s4 + $0x58] sm:$0xff]
      %v165 = vld [vmem:[%s4 + $0x60] sm:$0xff]
      %v166 = vld [vmem:[%s4 + $0x68] sm:$0xff]
      %v167 = vld [vmem:[%s4 + $0x70] sm:$0xff]
      %v168 = vld [vmem:[%s4 + $0x78] sm:$0xff]
      %v169 = vld [vmem:[%s4 + $0x80] sm:$0xff]
      %v170 = vld [vmem:[%s4 + $0x88] sm:$0xff]
      %v171 = vld [vmem:[%s4 + $0x90] sm:$0xff]
      %v172 = vld [vmem:[%s4 + $0x98] sm:$0xff]
      %v173 = vld [vmem:[%s4 + $0xa0] sm:$0xff]
      %v174 = vld [vmem:[%s4 + $0xa8] sm:$0xff]
      %v175 = vld [vmem:[%s4 + $0xb0] sm:$0xff]
      %v176 = vld [vmem:[%s4 + $0xb8] sm:$0xff]
      %v177 = vld [vmem:[%s4 + $0xc0] sm:$0xff]
      %v178 = vld [vmem:[%s4 + $0xc8] sm:$0xff]
      %v179 = vld [vmem:[%s4 + $0xd0] sm:$0xff]
      %v180 = vld [vmem:[%s4 + $0xd8] sm:$0xff]
      %v181 = vld [vmem:[%s4 + $0xe0] sm:$0xff]
      %v182 = vld [vmem:[%s4 + $0xe8] sm:$0xff]
      %v183 = vld [vmem:[%s4 + $0xf0] sm:$0xff]
      %v184 = vld [vmem:[%s4 + $0xf8] sm:$0xff]
      %186 = vset.pattern.permute.xlu0 0
      %187 = vperm.xlu0 %186, %v153
      %v188 = vpop.permute.xlu0 %187
      %191 = vset.pattern.permute.xlu0 0
      %192 = vperm.xlu0 %191, %v154
      %v193 = vpop.permute.xlu0 %192
      %196 = vset.pattern.permute.xlu0 0
      %197 = vperm.xlu0 %196, %v155
      %v198 = vpop.permute.xlu0 %197
      %201 = vset.pattern.permute.xlu0 0
      %202 = vperm.xlu0 %201, %v156
      %v203 = vpop.permute.xlu0 %202
      %206 = vset.pattern.permute.xlu0 0
      %207 = vperm.xlu0 %206, %v157
      %v208 = vpop.permute.xlu0 %207
      %211 = vset.pattern.permute.xlu0 0
      %212 = vperm.xlu0 %211, %v158
      %v213 = vpop.permute.xlu0 %212
      %216 = vset.pattern.permute.xlu0 0
      %217 = vperm.xlu0 %216, %v159
      %v218 = vpop.permute.xlu0 %217
      %221 = vset.pattern.permute.xlu0 0
      %222 = vperm.xlu0 %221, %v160
      %v223 = vpop.permute.xlu0 %222
      %226 = vset.pattern.permute.xlu0 0
      %227 = vperm.xlu0 %226, %v161
      %v228 = vpop.permute.xlu0 %227
      %231 = vset.pattern.permute.xlu0 0
      %232 = vperm.xlu0 %231, %v162
      %v233 = vpop.permute.xlu0 %232
      %236 = vset.pattern.permute.xlu0 0
      %237 = vperm.xlu0 %236, %v163
      %v238 = vpop.permute.xlu0 %237
      %241 = vset.pattern.permute.xlu0 0
      %242 = vperm.xlu0 %241, %v164
      %v243 = vpop.permute.xlu0 %242
      %246 = vset.pattern.permute.xlu0 0
      %247 = vperm.xlu0 %246, %v165
      %v248 = vpop.permute.xlu0 %247
      %251 = vset.pattern.permute.xlu0 0
      %252 = vperm.xlu0 %251, %v166
      %v253 = vpop.permute.xlu0 %252
      %256 = vset.pattern.permute.xlu0 0
      %257 = vperm.xlu0 %256, %v167
      %v258 = vpop.permute.xlu0 %257
      %261 = vset.pattern.permute.xlu0 0
      %262 = vperm.xlu0 %261, %v168
      %v263 = vpop.permute.xlu0 %262
      %266 = vset.pattern.permute.xlu0 0
      %267 = vperm.xlu0 %266, %v169
      %v268 = vpop.permute.xlu0 %267
      %271 = vset.pattern.permute.xlu0 0
      %272 = vperm.xlu0 %271, %v170
      %v273 = vpop.permute.xlu0 %272
      %276 = vset.pattern.permute.xlu0 0
      %277 = vperm.xlu0 %276, %v171
      %v278 = vpop.permute.xlu0 %277
      %281 = vset.pattern.permute.xlu0 0
      %282 = vperm.xlu0 %281, %v172
      %v283 = vpop.permute.xlu0 %282
      %286 = vset.pattern.permute.xlu0 0
      %287 = vperm.xlu0 %286, %v173
      %v288 = vpop.permute.xlu0 %287
      %291 = vset.pattern.permute.xlu0 0
      %292 = vperm.xlu0 %291, %v174
      %v293 = vpop.permute.xlu0 %292
      %296 = vset.pattern.permute.xlu0 0
      %297 = vperm.xlu0 %296, %v175
      %v298 = vpop.permute.xlu0 %297
      %301 = vset.pattern.permute.xlu0 0
      %302 = vperm.xlu0 %301, %v176
      %v303 = vpop.permute.xlu0 %302
      %306 = vset.pattern.permute.xlu0 0
      %307 = vperm.xlu0 %306, %v177
      %v308 = vpop.permute.xlu0 %307
      %311 = vset.pattern.permute.xlu0 0
      %312 = vperm.xlu0 %311, %v178
      %v313 = vpop.permute.xlu0 %312
      %316 = vset.pattern.permute.xlu0 0
      %317 = vperm.xlu0 %316, %v179
      %v318 = vpop.permute.xlu0 %317
      %321 = vset.pattern.permute.xlu0 0
      %322 = vperm.xlu0 %321, %v180
      %v323 = vpop.permute.xlu0 %322
      %326 = vset.pattern.permute.xlu0 0
      %327 = vperm.xlu0 %326, %v181
      %v328 = vpop.permute.xlu0 %327
      %331 = vset.pattern.permute.xlu0 0
      %332 = vperm.xlu0 %331, %v182
      %v333 = vpop.permute.xlu0 %332
      %336 = vset.pattern.permute.xlu0 0
      %337 = vperm.xlu0 %336, %v183
      %v338 = vpop.permute.xlu0 %337
      %341 = vset.pattern.permute.xlu0 0
      %342 = vperm.xlu0 %341, %v184
      %v343 = vpop.permute.xlu0 %342
      %vm345 = vcmask 523264
      %v347 = vsel %vm345, %v121, 0
      %v350 = vsel %vm345, %v122, 0
      %v353 = vsel %vm345, %v123, 0
      %v356 = vsel %vm345, %v124, 0
      %v359 = vsel %vm345, %v125, 0
      %v362 = vsel %vm345, %v126, 0
      %v365 = vsel %vm345, %v127, 0
      %v368 = vsel %vm345, %v128, 0
      %v371 = vsel %vm345, %v129, 0
      %v374 = vsel %vm345, %v130, 0
      %v377 = vsel %vm345, %v131, 0
      %v380 = vsel %vm345, %v132, 0
      %v383 = vsel %vm345, %v133, 0
      %v386 = vsel %vm345, %v134, 0
      %v389 = vsel %vm345, %v135, 0
      %v392 = vsel %vm345, %v136, 0
      %v395 = vsel %vm345, %v137, 0
      %v398 = vsel %vm345, %v138, 0
      %v401 = vsel %vm345, %v139, 0
      %v404 = vsel %vm345, %v140, 0
      %v407 = vsel %vm345, %v141, 0
      %v410 = vsel %vm345, %v142, 0
      %v413 = vsel %vm345, %v143, 0
      %v416 = vsel %vm345, %v144, 0
      %v419 = vsel %vm345, %v145, 0
      %v422 = vsel %vm345, %v146, 0
      %v425 = vsel %vm345, %v147, 0
      %v428 = vsel %vm345, %v148, 0
      %v431 = vsel %vm345, %v149, 0
      %v434 = vsel %vm345, %v150, 0
      %v437 = vsel %vm345, %v151, 0
      %v440 = vsel %vm345, %v152, 0
      %v443 = vsel %vm345, %v120, 0
      %445 = vmatprep.subr.mxu0 0.0
      %446 = vmatpush1.xpose.msra.mxu0 0.0
      %447 = vmatprep.subr.mxu0 0.0
      %448 = vmatpush1.xpose.msra.mxu0 0.0
      %449 = vmatprep.subr.mxu0 0.0
      %450 = vmatpush1.xpose.msra.mxu0 0.0
      %451 = vmatprep.subr.mxu0 0.0
      %452 = vmatpush1.xpose.msra.mxu0 0.0
      %453 = vmatprep.subr.mxu0 0.0
      %454 = vmatpush1.xpose.msra.mxu0 0.0
      %455 = vmatprep.subr.mxu0 0.0
      %456 = vmatpush1.xpose.msra.mxu0 0.0
      %457 = vmatprep.subr.mxu0 0.0
      %458 = vmatpush1.xpose.msra.mxu0 0.0
      %459 = vmatprep.subr.mxu0 0.0
      %460 = vmatpush1.xpose.msra.mxu0 0.0
      %461 = vmatprep.subr.mxu0 0.0
      %462 = vmatpush1.xpose.msra.mxu0 0.0
      %463 = vmatprep.subr.mxu0 0.0
      %464 = vmatpush1.xpose.msra.mxu0 0.0
      %465 = vmatprep.subr.mxu0 0.0
      %466 = vmatpush1.xpose.msra.mxu0 0.0
      %467 = vmatprep.subr.mxu0 0.0
      %468 = vmatpush1.xpose.msra.mxu0 0.0
      %469 = vmatprep.subr.mxu0 0.0
      %470 = vmatpush1.xpose.msra.mxu0 0.0
      %471 = vmatprep.subr.mxu0 0.0
      %472 = vmatpush1.xpose.msra.mxu0 0.0
      %473 = vmatprep.subr.mxu0 0.0
      %474 = vmatpush1.xpose.msra.mxu0 0.0
      %475 = vmatprep.subr.mxu0 0.0
      %476 = vmatpush1.xpose.msra.mxu0 %v443
      %477 = vmatprep.subr.mxu0 0.0
      %478 = vmatpush2.xpose.msra.mxu0 0.0
      %479 = vmatprep.subr.mxu0 0.0
      %480 = vmatpush2.xpose.msra.mxu0 0.0
      %481 = vmatprep.subr.mxu0 0.0
      %482 = vmatpush2.xpose.msra.mxu0 0.0
      %483 = vmatprep.subr.mxu0 0.0
      %484 = vmatpush2.xpose.msra.mxu0 0.0
      %485 = vmatprep.subr.mxu0 0.0
      %486 = vmatpush2.xpose.msra.mxu0 0.0
      %487 = vmatprep.subr.mxu0 0.0
      %488 = vmatpush2.xpose.msra.mxu0 0.0
      %489 = vmatprep.subr.mxu0 0.0
      %490 = vmatpush2.xpose.msra.mxu0 0.0
      %491 = vmatprep.subr.mxu0 0.0
      %492 = vmatpush2.xpose.msra.mxu0 0.0
      %493 = vmatprep.subr.mxu0 0.0
      %494 = vmatpush2.xpose.msra.mxu0 0.0
      %495 = vmatprep.subr.mxu0 0.0
      %496 = vmatpush2.xpose.msra.mxu0 0.0
      %497 = vmatprep.subr.mxu0 0.0
      %498 = vmatpush2.xpose.msra.mxu0 0.0
      %499 = vmatprep.subr.mxu0 0.0
      %500 = vmatpush2.xpose.msra.mxu0 0.0
      %501 = vmatprep.subr.mxu0 0.0
      %502 = vmatpush2.xpose.msra.mxu0 0.0
      %503 = vmatprep.subr.mxu0 0.0
      %504 = vmatpush2.xpose.msra.mxu0 0.0
      %505 = vmatprep.subr.mxu0 0.0
      %506 = vmatpush2.xpose.msra.mxu0 0.0
      %507 = vmatprep.subr.mxu0 0.0
      %508 = vmatpush2.xpose.msra.mxu0 0.0
      %509 = vmatprep.mubr.f32.mxu0 0.0
      %510 = vmatmul.mubr.f32.gmra.mxu0 %v347
      %v511 = vpop.f32.mrf.mxu0
      %v512 = vadd.f32 %v188, %v511
      %v513 = vpop.f32.mrf.mxu0
      %514 = vmatprep.mubr.f32.mxu0 0.0
      %515 = vmatmul.mubr.f32.gmra.mxu0 %v350
      %v516 = vpop.f32.mrf.mxu0
      %v517 = vadd.f32 %v193, %v516
      %v518 = vpop.f32.mrf.mxu0
      %519 = vmatprep.mubr.f32.mxu0 0.0
      %520 = vmatmul.mubr.f32.gmra.mxu0 %v353
      %v521 = vpop.f32.mrf.mxu0
      %v522 = vadd.f32 %v198, %v521
      %v523 = vpop.f32.mrf.mxu0
      %524 = vmatprep.mubr.f32.mxu0 0.0
      %525 = vmatmul.mubr.f32.gmra.mxu0 %v356
      %v526 = vpop.f32.mrf.mxu0
      %v527 = vadd.f32 %v203, %v526
      %v528 = vpop.f32.mrf.mxu0
      %529 = vmatprep.mubr.f32.mxu0 0.0
      %530 = vmatmul.mubr.f32.gmra.mxu0 %v359
      %v531 = vpop.f32.mrf.mxu0
      %v532 = vadd.f32 %v208, %v531
      %v533 = vpop.f32.mrf.mxu0
      %534 = vmatprep.mubr.f32.mxu0 0.0
      %535 = vmatmul.mubr.f32.gmra.mxu0 %v362
      %v536 = vpop.f32.mrf.mxu0
      %v537 = vadd.f32 %v213, %v536
      %v538 = vpop.f32.mrf.mxu0
      %539 = vmatprep.mubr.f32.mxu0 0.0
      %540 = vmatmul.mubr.f32.gmra.mxu0 %v365
      %v541 = vpop.f32.mrf.mxu0
      %v542 = vadd.f32 %v218, %v541
      %v543 = vpop.f32.mrf.mxu0
      %544 = vmatprep.mubr.f32.mxu0 0.0
      %545 = vmatmul.mubr.f32.gmra.mxu0 %v368
      %v546 = vpop.f32.mrf.mxu0
      %v547 = vadd.f32 %v223, %v546
      %v548 = vpop.f32.mrf.mxu0
      %549 = vmatprep.mubr.f32.mxu0 0.0
      %550 = vmatmul.mubr.f32.gmra.mxu0 %v371
      %v551 = vpop.f32.mrf.mxu0
      %v552 = vadd.f32 %v228, %v551
      %v553 = vpop.f32.mrf.mxu0
      %554 = vmatprep.mubr.f32.mxu0 0.0
      %555 = vmatmul.mubr.f32.gmra.mxu0 %v374
      %v556 = vpop.f32.mrf.mxu0
      %v557 = vadd.f32 %v233, %v556
      %v558 = vpop.f32.mrf.mxu0
      %559 = vmatprep.mubr.f32.mxu0 0.0
      %560 = vmatmul.mubr.f32.gmra.mxu0 %v377
      %v561 = vpop.f32.mrf.mxu0
      %v562 = vadd.f32 %v238, %v561
      %v563 = vpop.f32.mrf.mxu0
      %564 = vmatprep.mubr.f32.mxu0 0.0
      %565 = vmatmul.mubr.f32.gmra.mxu0 %v380
      %v566 = vpop.f32.mrf.mxu0
      %v567 = vadd.f32 %v243, %v566
      %v568 = vpop.f32.mrf.mxu0
      %569 = vmatprep.mubr.f32.mxu0 0.0
      %570 = vmatmul.mubr.f32.gmra.mxu0 %v383
      %v571 = vpop.f32.mrf.mxu0
      %v572 = vadd.f32 %v248, %v571
      %v573 = vpop.f32.mrf.mxu0
      %574 = vmatprep.mubr.f32.mxu0 0.0
      %575 = vmatmul.mubr.f32.gmra.mxu0 %v386
      %v576 = vpop.f32.mrf.mxu0
      %v577 = vadd.f32 %v253, %v576
      %v578 = vpop.f32.mrf.mxu0
      %579 = vmatprep.mubr.f32.mxu0 0.0
      %580 = vmatmul.mubr.f32.gmra.mxu0 %v389
      %v581 = vpop.f32.mrf.mxu0
      %v582 = vadd.f32 %v258, %v581
      %v583 = vpop.f32.mrf.mxu0
      %584 = vmatprep.mubr.f32.mxu0 0.0
      %585 = vmatmul.mubr.f32.gmra.mxu0 %v392
      %v586 = vpop.f32.mrf.mxu0
      %v587 = vadd.f32 %v263, %v586
      %v588 = vpop.f32.mrf.mxu0
      %589 = vmatprep.mubr.f32.mxu0 0.0
      %590 = vmatmul.mubr.f32.gmra.mxu0 %v395
      %v591 = vpop.f32.mrf.mxu0
      %v592 = vadd.f32 %v268, %v591
      %v593 = vpop.f32.mrf.mxu0
      %594 = vmatprep.mubr.f32.mxu0 0.0
      %595 = vmatmul.mubr.f32.gmra.mxu0 %v398
      %v596 = vpop.f32.mrf.mxu0
      %v597 = vadd.f32 %v273, %v596
      %v598 = vpop.f32.mrf.mxu0
      %599 = vmatprep.mubr.f32.mxu0 0.0
      %600 = vmatmul.mubr.f32.gmra.mxu0 %v401
      %v601 = vpop.f32.mrf.mxu0
      %v602 = vadd.f32 %v278, %v601
      %v603 = vpop.f32.mrf.mxu0
      %604 = vmatprep.mubr.f32.mxu0 0.0
      %605 = vmatmul.mubr.f32.gmra.mxu0 %v404
      %v606 = vpop.f32.mrf.mxu0
      %v607 = vadd.f32 %v283, %v606
      %v608 = vpop.f32.mrf.mxu0
      %609 = vmatprep.mubr.f32.mxu0 0.0
      %610 = vmatmul.mubr.f32.gmra.mxu0 %v407
      %v611 = vpop.f32.mrf.mxu0
      %v612 = vadd.f32 %v288, %v611
      %v613 = vpop.f32.mrf.mxu0
      %614 = vmatprep.mubr.f32.mxu0 0.0
      %615 = vmatmul.mubr.f32.gmra.mxu0 %v410
      %v616 = vpop.f32.mrf.mxu0
      %v617 = vadd.f32 %v293, %v616
      %v618 = vpop.f32.mrf.mxu0
      %619 = vmatprep.mubr.f32.mxu0 0.0
      %620 = vmatmul.mubr.f32.gmra.mxu0 %v413
      %v621 = vpop.f32.mrf.mxu0
      %v622 = vadd.f32 %v298, %v621
      %v623 = vpop.f32.mrf.mxu0
      %624 = vmatprep.mubr.f32.mxu0 0.0
      %625 = vmatmul.mubr.f32.gmra.mxu0 %v416
      %v626 = vpop.f32.mrf.mxu0
      %v627 = vadd.f32 %v303, %v626
      %v628 = vpop.f32.mrf.mxu0
      %629 = vmatprep.mubr.f32.mxu0 0.0
      %630 = vmatmul.mubr.f32.gmra.mxu0 %v419
      %v631 = vpop.f32.mrf.mxu0
      %v632 = vadd.f32 %v308, %v631
      %v633 = vpop.f32.mrf.mxu0
      %634 = vmatprep.mubr.f32.mxu0 0.0
      %635 = vmatmul.mubr.f32.gmra.mxu0 %v422
      %v636 = vpop.f32.mrf.mxu0
      %v637 = vadd.f32 %v313, %v636
      %v638 = vpop.f32.mrf.mxu0
      %639 = vmatprep.mubr.f32.mxu0 0.0
      %640 = vmatmul.mubr.f32.gmra.mxu0 %v425
      %v641 = vpop.f32.mrf.mxu0
      %v642 = vadd.f32 %v318, %v641
      %v643 = vpop.f32.mrf.mxu0
      %644 = vmatprep.mubr.f32.mxu0 0.0
      %645 = vmatmul.mubr.f32.gmra.mxu0 %v428
      %v646 = vpop.f32.mrf.mxu0
      %v647 = vadd.f32 %v323, %v646
      %v648 = vpop.f32.mrf.mxu0
      %649 = vmatprep.mubr.f32.mxu0 0.0
      %650 = vmatmul.mubr.f32.gmra.mxu0 %v431
      %v651 = vpop.f32.mrf.mxu0
      %v652 = vadd.f32 %v328, %v651
      %v653 = vpop.f32.mrf.mxu0
      %654 = vmatprep.mubr.f32.mxu0 0.0
      %655 = vmatmul.mubr.f32.gmra.mxu0 %v434
      %v656 = vpop.f32.mrf.mxu0
      %v657 = vadd.f32 %v333, %v656
      %v658 = vpop.f32.mrf.mxu0
      %659 = vmatprep.mubr.f32.mxu0 0.0
      %660 = vmatmul.mubr.f32.gmra.mxu0 %v437
      %v661 = vpop.f32.mrf.mxu0
      %v662 = vadd.f32 %v338, %v661
      %v663 = vpop.f32.mrf.mxu0
      %664 = vmatprep.mubr.f32.mxu0 0.0
      %665 = vmatmul.mubr.f32.gmra.mxu0 %v440
      %v666 = vpop.f32.mrf.mxu0
      %v667 = vadd.f32 %v343, %v666
      %v668 = vpop.f32.mrf.mxu0
      %669 = vdwg.mxu0
      %v670 = vmax.f32 %v512, 0.0
      %v671 = vmax.f32 %v517, 0.0
      %v672 = vmax.f32 %v522, 0.0
      %v673 = vmax.f32 %v527, 0.0
      %v674 = vmax.f32 %v532, 0.0
      %v675 = vmax.f32 %v537, 0.0
      %v676 = vmax.f32 %v542, 0.0
      %v677 = vmax.f32 %v547, 0.0
      %v678 = vmax.f32 %v552, 0.0
      %v679 = vmax.f32 %v557, 0.0
      %v680 = vmax.f32 %v562, 0.0
      %v681 = vmax.f32 %v567, 0.0
      %v682 = vmax.f32 %v572, 0.0
      %v683 = vmax.f32 %v577, 0.0
      %v684 = vmax.f32 %v582, 0.0
      %v685 = vmax.f32 %v587, 0.0
      %v686 = vmax.f32 %v592, 0.0
      %v687 = vmax.f32 %v597, 0.0
      %v688 = vmax.f32 %v602, 0.0
      %v689 = vmax.f32 %v607, 0.0
      %v690 = vmax.f32 %v612, 0.0
      %v691 = vmax.f32 %v617, 0.0
      %v692 = vmax.f32 %v622, 0.0
      %v693 = vmax.f32 %v627, 0.0
      %v694 = vmax.f32 %v632, 0.0
      %v695 = vmax.f32 %v637, 0.0
      %v696 = vmax.f32 %v642, 0.0
      %v697 = vmax.f32 %v647, 0.0
      %v698 = vmax.f32 %v652, 0.0
      %v699 = vmax.f32 %v657, 0.0
      %v700 = vmax.f32 %v662, 0.0
      %v701 = vmax.f32 %v667, 0.0
      %v702 = vld [vmem:[%s5] sm:$0x3]
      %v703 = vstv %s76
      %v705 = vlaneseq
      %v706 = vshrl.u32 %v705, 7
      %v707 = vsub.s32 0, %v706
      %v708 = vrot.slane %v702, %v707
      %v709 = vlaneseq
      %v710 = vshrl.u32 %v709, 7
      %v711 = vsub.s32 1, %v710
      %v712 = vrot.slane %v702, %v711
      %715 = vmatprep.subr.mxu0 0.0
      %716 = vmatpush1.msra.mxu0 %v685
      %717 = vmatprep.subr.mxu0 0.0
      %718 = vmatpush1.msra.mxu0 %v684
      %719 = vmatprep.subr.mxu0 0.0
      %720 = vmatpush1.msra.mxu0 %v683
      %721 = vmatprep.subr.mxu0 0.0
      %722 = vmatpush1.msra.mxu0 %v682
      %723 = vmatprep.subr.mxu0 0.0
      %724 = vmatpush1.msra.mxu0 %v681
      %725 = vmatprep.subr.mxu0 0.0
      %726 = vmatpush1.msra.mxu0 %v680
      %727 = vmatprep.subr.mxu0 0.0
      %728 = vmatpush1.msra.mxu0 %v679
      %729 = vmatprep.subr.mxu0 0.0
      %730 = vmatpush1.msra.mxu0 %v678
      %731 = vmatprep.subr.mxu0 0.0
      %732 = vmatpush1.msra.mxu0 %v677
      %733 = vmatprep.subr.mxu0 0.0
      %734 = vmatpush1.msra.mxu0 %v676
      %735 = vmatprep.subr.mxu0 0.0
      %736 = vmatpush1.msra.mxu0 %v675
      %737 = vmatprep.subr.mxu0 0.0
      %738 = vmatpush1.msra.mxu0 %v674
      %739 = vmatprep.subr.mxu0 0.0
      %740 = vmatpush1.msra.mxu0 %v673
      %741 = vmatprep.subr.mxu0 0.0
      %742 = vmatpush1.msra.mxu0 %v672
      %743 = vmatprep.subr.mxu0 0.0
      %744 = vmatpush1.msra.mxu0 %v671
      %745 = vmatprep.subr.mxu0 0.0
      %746 = vmatpush1.msra.mxu0 %v670
      %747 = vmatprep.subr.mxu0 0.0
      %748 = vmatpush2.msra.mxu0 %v701
      %749 = vmatprep.subr.mxu0 0.0
      %750 = vmatpush2.msra.mxu0 %v700
      %751 = vmatprep.subr.mxu0 0.0
      %752 = vmatpush2.msra.mxu0 %v699
      %753 = vmatprep.subr.mxu0 0.0
      %754 = vmatpush2.msra.mxu0 %v698
      %755 = vmatprep.subr.mxu0 0.0
      %756 = vmatpush2.msra.mxu0 %v697
      %757 = vmatprep.subr.mxu0 0.0
      %758 = vmatpush2.msra.mxu0 %v696
      %759 = vmatprep.subr.mxu0 0.0
      %760 = vmatpush2.msra.mxu0 %v695
      %761 = vmatprep.subr.mxu0 0.0
      %762 = vmatpush2.msra.mxu0 %v694
      %763 = vmatprep.subr.mxu0 0.0
      %764 = vmatpush2.msra.mxu0 %v693
      %765 = vmatprep.subr.mxu0 0.0
      %766 = vmatpush2.msra.mxu0 %v692
      %767 = vmatprep.subr.mxu0 0.0
      %768 = vmatpush2.msra.mxu0 %v691
      %769 = vmatprep.subr.mxu0 0.0
      %770 = vmatpush2.msra.mxu0 %v690
      %771 = vmatprep.subr.mxu0 0.0
      %772 = vmatpush2.msra.mxu0 %v689
      %773 = vmatprep.subr.mxu0 0.0
      %774 = vmatpush2.msra.mxu0 %v688
      %775 = vmatprep.subr.mxu0 0.0
      %776 = vmatpush2.msra.mxu0 %v687
      %777 = vmatprep.subr.mxu0 0.0
      %778 = vmatpush2.msra.mxu0 %v686
      %779 = vmatprep.mubr.f32.mxu0 %v712
      %780 = vmatmul.mubr.f32.gmra.mxu0 %v708
      %v781 = vpop.f32.mrf.mxu0
      %v782 = vadd.f32 %v703, %v781
      %v783 = vpop.f32.mrf.mxu0
      %784 = vdwg.mxu0
      %v785 = vtanh.pop %v782
      %vm786 = vcmask 8192
      %787 = vst.msk [vmem:[#allocation6] sm:$0x1] %vm786, %v785
    $region37: #{value_head.1} parent=1 // pred_fallthru
      _
    // Predicated region
    $region38: #{value_head.1} parent=1 // pred_check
      _
    $region39: #{value_head.1} parent=1 // pred_check_branch
      %789 = sbr.rel (0) target = $region41
    $region40: #{value_head.1} parent=1 // pred_region
      %s791 = ssub.s32 16, 16
      %792 = vsyncadd [#allocation4], %s791
      %s794 = sshll.u32 [#allocation6], 4
      %s795 = int_to_ptr.vmem [resolvable:$true] %s794
      %797 = dma.vmem_to_hbm [thread:$0]  %s795, 16, %s6, [#allocation4]
    $region41: #{value_head.1} parent=1 // pred_fallthru
      _
    // Predicated region
    $region42: #{value_head.1} parent=1 // pred_check
      _
    $region43: #{value_head.1} parent=1 // pred_check_branch
      %799 = sbr.rel (0) target = $region45
    $region44: #{value_head.1} parent=1 // pred_region
      %800 = dma.done [#allocation4], 16
    $region45: #{value_head.1} parent=1 // pred_fallthru
      _
    %801 = vsyncpa [#allocation4], 1
    %802 = vsyncpa [#allocation5], 1

</llo_original>
